<compile_context>
chip_gen: v7x
topology: tpu7x:2x2x1
jax: 0.10.0
libtpu: 0.0.40
codegen_flags: <defaults>
</compile_context>

<pallas_src>
import functools

import jax
import jax.numpy as jnp
from jax.experimental import pallas as pl
from jax.experimental.pallas import tpu as pltpu


def _lgsf_kernel(x_ref, w_ref, b_ref, m_ref, o_ref, *, mm_dtype, wide_ones):
    # x_ref: (bt, T, KD)   lane axis = K*D (K groups of D flattened together)
    # w_ref: (KD, 2*KD)    block-diagonal [W1 | W2], mm_dtype
    # b_ref: (1, 2*KD)     [tile(b1, K) | tile(b2, K)], f32
    # m_ref: (KD, KD) or (2KD, 2KD) block-diagonal ones (per-group sum+bcast)
    # o_ref: (bt, T, KD)
    bt, T, KD = x_ref.shape
    rows = bt * T

    x = x_ref[...].reshape(rows, KD).astype(mm_dtype)

    # fused glob1/glob2: one MXU matmul (f32 accumulation) + bias + relu
    h = jnp.dot(x, w_ref[...], preferred_element_type=jnp.float32) + b_ref[...]
    h = jnp.maximum(h, 0.0)
    x1 = h[:, :KD].reshape(bt, T, KD)          # relu(glob1(x))
    x2 = h[:, KD:].reshape(bt, T, KD)          # relu(glob2(x))

    # per-(b, k) global token: mean over T; kept (bt, 1, KD), never tiled to T
    g = jnp.mean(x2, axis=1, keepdims=True)                      # f32

    # per-group reductions (<x1,g>, ||x1||^2, ||g||^2) broadcast back over each
    # group's D lanes with ONE matmul against a block-diagonal ones matrix.
    p12 = (x1 * g).reshape(rows, KD)
    p11 = (x1 * x1).reshape(rows, KD)
    gsq = (g * g).reshape(bt, KD)
    if wide_ones:
        # v6e/v7x: fill the 256-wide MXU -> (rows+bt, 2KD) @ blockdiag(m, m)
        lhs = jnp.concatenate(
            [jnp.concatenate([p12, p11], axis=1),
             jnp.concatenate([gsq, gsq], axis=1)], axis=0).astype(mm_dtype)
        red = jnp.dot(lhs, m_ref[...], preferred_element_type=jnp.float32)
        w12 = red[:rows, :KD].reshape(bt, T, KD)
        w11 = red[:rows, KD:].reshape(bt, T, KD)
        gg = red[rows:, :KD].reshape(bt, 1, KD)
    else:
        # v5e: 128-wide MXU pass is already full -> stack along M instead,
        # same FLOPs, single weight push / result drain.
        lhs = jnp.concatenate([p12, p11, gsq], axis=0).astype(mm_dtype)
        red = jnp.dot(lhs, m_ref[...], preferred_element_type=jnp.float32)
        w12 = red[:rows].reshape(bt, T, KD)
        w11 = red[rows:2 * rows].reshape(bt, T, KD)
        gg = red[2 * rows:].reshape(bt, 1, KD)

    # cosine similarity (dot / max(||a||*||b||, 1e-8)) -> sigmoid gate * global
    inv = jax.lax.rsqrt(jnp.maximum(w11 * gg, jnp.float32(1e-16)))   # EUP rsqrt
    rel = 0.5 * jnp.tanh(0.5 * (w12 * inv)) + 0.5                    # sigmoid via EUP tanh
    o_ref[...] = (rel * g).astype(o_ref.dtype)


def _use_wide_ones():
    """2KD-wide ones-matmul only on chips with a 256x256 MXU (v6e / v7x)."""
    try:
        kind = jax.devices()[0].device_kind.lower()
    except Exception:
        return False
    for tag in ("v2", "v3", "v4", "v5"):
        if tag in kind:
            return False
    return ("v6" in kind) or ("v7" in kind)


def _fused_params(w1, b1, w2, b2, K, mm_dtype, wide_ones):
    """Block-diagonal fused weight/bias and the per-group ones matrix."""
    D = w1.shape[0]
    KD = K * D
    eye = jnp.eye(K, dtype=jnp.float32)
    wbig = jnp.concatenate([jnp.kron(eye, w1), jnp.kron(eye, w2)], axis=1)   # (KD, 2KD)
    bbig = jnp.concatenate([jnp.tile(b1, K), jnp.tile(b2, K)]).reshape(1, 2 * KD)
    ones_blk = jnp.kron(eye, jnp.ones((D, D), jnp.float32))                  # (KD, KD)
    if wide_ones:
        ones_blk = jnp.kron(jnp.eye(2, dtype=jnp.float32), ones_blk)         # (2KD, 2KD)
    return wbig.astype(mm_dtype), bbig.astype(jnp.float32), ones_blk.astype(mm_dtype)


def _choose_bt(B, T, KD, target_tile_bytes=1 << 20):
    """Batch rows per grid step: ~1 MiB x tile, prefer an even grid length >= 2."""
    row_bytes = T * KD * 4
    max_bt = max(1, target_tile_bytes // row_bytes)
    best_key, best_d = None, 1
    for d in range(1, B + 1):
        if B % d:
            continue
        grid = B // d
        fits = d <= max_bt
        multi = (grid >= 2) or (B < 2)            # keep both v7x TCs busy
        even = (grid % 2 == 0) or (B < 2)         # balanced megacore sharding
        key = (fits, multi, even, d)
        if best_key is None or key > best_key:
            best_key, best_d = key, d
    return best_d


def lgsf_forward(x, w1, b1, w2, b2, *, matmul_dtype=jnp.bfloat16):
    """x: (B, T, K, D) float32.  w1/w2 are pre-transposed vs torch nn.Linear
    (kernel computes x @ W + b; torch does x @ W.T + b).  Returns (B*T, K, D)."""
    B, T, K, D = x.shape
    KD = K * D
    x2d = x.reshape(B, T, KD)                      # contiguous -> free, no transpose

    wide = _use_wide_ones()
    wbig, bbig, ones_mat = _fused_params(w1, b1, w2, b2, K, matmul_dtype, wide)

    bt = _choose_bt(B, T, KD)
    grid = (B // bt,)

    # VMEM budgeting: double-buffered in/out tiles + ~12x tile of live temps.
    tile_bytes = bt * T * KD * 4
    const_bytes = (wbig.size * wbig.dtype.itemsize
                   + bbig.size * bbig.dtype.itemsize
                   + ones_mat.size * ones_mat.dtype.itemsize)
    est_vmem = 16 * tile_bytes + 2 * const_bytes
    # TODO(synk): two-pass T-tiled path (accumulate g, then stream T tiles) for
    # very long sequences; for now require that one (bt, T, KD) block fits.
    assert est_vmem <= (48 << 20), (
        f"per-step VMEM footprint {est_vmem} bytes too large; T-tiling needed")
    vmem_limit = int(min(max(est_vmem * 3 // 2, 8 << 20), 48 << 20))

    kernel = functools.partial(_lgsf_kernel, mm_dtype=matmul_dtype, wide_ones=wide)

    def build(single_buffer_consts):
        const_kw = {"pipeline_mode": pl.Buffered(1)} if single_buffer_consts else {}
        in_specs = [
            pl.BlockSpec((bt, T, KD), lambda i: (i, 0, 0)),
            pl.BlockSpec(wbig.shape, lambda i: (0, 0), **const_kw),
            pl.BlockSpec(bbig.shape, lambda i: (0, 0), **const_kw),
            pl.BlockSpec(ones_mat.shape, lambda i: (0, 0), **const_kw),
        ]
        return pl.pallas_call(
            kernel,
            out_shape=jax.ShapeDtypeStruct((B, T, KD), jnp.float32),
            grid_spec=pltpu.PrefetchScalarGridSpec(
                num_scalar_prefetch=0,
                grid=grid,
                in_specs=in_specs,
                out_specs=pl.BlockSpec((bt, T, KD), lambda i: (i, 0, 0)),
            ),
            compiler_params=pltpu.CompilerParams(
                dimension_semantics=("parallel",),
                vmem_limit_bytes=vmem_limit,
            ),
        )

    try:
        out2d = build(True)(x2d, wbig, bbig, ones_mat)
    except Exception:
        # pipeline_mode=Buffered(1) not supported on this jax version: retry
        # with default double-buffered constants (only costs ~200 KB of VMEM).
        out2d = build(False)(x2d, wbig, bbig, ones_mat)

    # (B, T, K*D) -> (B*T, K, D): contiguous reshape, no transpose / extra HBM pass
    return out2d.reshape(B * T, K, D)


def _reference(x, w1, b1, w2, b2):
    """Pure-JAX f32 reference of the PyTorch forward (y=None branch)."""
    B, T, K, D = x.shape
    hp = jax.lax.Precision.HIGHEST
    xb = jnp.transpose(x, (0, 2, 1, 3)).reshape(B * K, T, D)
    x1 = jax.nn.relu(jnp.dot(xb, w1, precision=hp) + b1)
    x2 = jax.nn.relu(jnp.dot(xb, w2, precision=hp) + b2)
    g = jnp.mean(x2, axis=-2, keepdims=True)
    w12 = jnp.sum(x1 * g, axis=-1)
    denom = jnp.sqrt(jnp.maximum(jnp.sum(x1 * x1, -1) * jnp.sum(g * g, -1), 1e-16))
    rel = jax.nn.sigmoid(w12 / denom)[..., None]
    out = rel * g
    return out.reshape(B, K, T, D).transpose(0, 2, 1, 3).reshape(B * T, K, D)


if __name__ == "__main__":
    B, T, K, D = 2, 8, 4, 32   # K*D = 128 -> fully lane-dense tiles

    key = jax.random.PRNGKey(0)
    kx, k1, k2, k3, k4 = jax.random.split(key, 5)

    x = jax.random.normal(kx, (B, T, K, D), dtype=jnp.float32)

    # deterministic nn.Linear-style init: U(-1/sqrt(D), 1/sqrt(D)),
    # stored already transposed (kernel computes x @ W + b; torch does x @ W.T + b)
    bound = 1.0 / (D ** 0.5)
    w1 = jax.random.uniform(k1, (D, D), jnp.float32, -bound, bound)
    b1 = jax.random.uniform(k2, (D,), jnp.float32, -bound, bound)
    w2 = jax.random.uniform(k3, (D, D), jnp.float32, -bound, bound)
    b2 = jax.random.uniform(k4, (D,), jnp.float32, -bound, bound)

    ref = _reference(x, w1, b1, w2, b2)

    # exactness check: f32 MXU mode must match the reference tightly
    out_f32 = jax.block_until_ready(
        lgsf_forward(x, w1, b1, w2, b2, matmul_dtype=jnp.float32))
    assert out_f32.shape == (B * T, K, D), out_f32.shape
    assert jnp.allclose(out_f32, ref, atol=1e-4, rtol=1e-4), "f32 mismatch vs reference"

    # default fast path: bf16 MXU operands, f32 accumulation / epilogue
    out = jax.block_until_ready(lgsf_forward(x, w1, b1, w2, b2))
    assert out.shape == (B * T, K, D), out.shape
    assert jnp.allclose(out, ref, atol=2e-2, rtol=2e-2), "bf16 mismatch vs reference"

    # TODO(synk): is_cross=True branch (shared `glob` Linear applied to x and y)
    # reuses the same kernel structure with a second lane-dense input ref; not
    # exercised here (the forward spec is the y=None path).
    print("KERNEL_OK")
</pallas_src>

<mosaic_0001>
module attributes {stable_mosaic.version = 11 : i64} {
  func.func @_lgsf_kernel(%arg0: i32, %arg1: memref<1x8x128xf32, #tpu.memory_space<vmem>>, %arg2: memref<128x256xf32, #tpu.memory_space<vmem>>, %arg3: memref<1x256xf32, #tpu.memory_space<vmem>>, %arg4: memref<128x128xf32, #tpu.memory_space<vmem>>, %arg5: memref<1x8x128xf32, #tpu.memory_space<vmem>>) attributes {dimension_semantics = [#tpu.dimension_semantics<parallel>], iteration_bounds = array<i64: 2>, scalar_prefetch = 0 : i64, scratch_operands = 0 : i64, tpu.core_type = #tpu.core_type<tc>, window_params = [{transform_indices = @transform_0, window_bounds = array<i64: 1, 8, 128>}, {pipeline_mode = #tpu.pipeline_mode<synchronous>, transform_indices = @transform_1, window_bounds = array<i64: 128, 256>}, {pipeline_mode = #tpu.pipeline_mode<synchronous>, transform_indices = @transform_2, window_bounds = array<i64: 1, 256>}, {pipeline_mode = #tpu.pipeline_mode<synchronous>, transform_indices = @transform_3, window_bounds = array<i64: 128, 128>}, {transform_indices = @transform_4, window_bounds = array<i64: 1, 8, 128>}]} {
    %c0 = arith.constant 0 : index
    %c0_0 = arith.constant 0 : index
    %c0_1 = arith.constant 0 : index
    %0 = vector.load %arg1[%c0, %c0_0, %c0_1] : memref<1x8x128xf32, #tpu.memory_space<vmem>>, vector<1x8x128xf32>
    %1 = vector.shape_cast %0 : vector<1x8x128xf32> to vector<8x128xf32>
    %c0_2 = arith.constant 0 : index
    %c0_3 = arith.constant 0 : index
    %2 = vector.load %arg2[%c0_2, %c0_3] : memref<128x256xf32, #tpu.memory_space<vmem>>, vector<128x256xf32>
    %cst = arith.constant dense<0.000000e+00> : vector<8x256xf32>
    %3 = tpu.matmul %1, %2, %cst {dimension_numbers = #tpu.dot_dimension_numbers<[1], [0], [0], [1], [0, 0, 1, 1], [], []>} : vector<8x128xf32>, vector<128x256xf32>, vector<8x256xf32> -> vector<8x256xf32>
    %c0_4 = arith.constant 0 : index
    %c0_5 = arith.constant 0 : index
    %4 = vector.load %arg3[%c0_4, %c0_5] : memref<1x256xf32, #tpu.memory_space<vmem>>, vector<1x256xf32>
    %5 = vector.broadcast %4 : vector<1x256xf32> to vector<8x256xf32>
    %6 = arith.addf %3, %5 : vector<8x256xf32>
    %cst_6 = arith.constant 0.000000e+00 : f32
    %7 = vector.broadcast %cst_6 : f32 to vector<8x256xf32>
    %8 = arith.maximumf %6, %7 : vector<8x256xf32>
    %9 = vector.extract_strided_slice %8 {offsets = [0, 0], sizes = [8, 128], strides = [1, 1]} : vector<8x256xf32> to vector<8x128xf32>
    %10 = vector.shape_cast %9 : vector<8x128xf32> to vector<1x8x128xf32>
    %11 = vector.extract_strided_slice %8 {offsets = [0, 128], sizes = [8, 128], strides = [1, 1]} : vector<8x256xf32> to vector<8x128xf32>
    %12 = vector.shape_cast %11 : vector<8x128xf32> to vector<1x8x128xf32>
    %cst_7 = arith.constant dense<0.000000e+00> : vector<1x128xf32>
    %13 = vector.multi_reduction <add>, %12, %cst_7 [1] : vector<1x8x128xf32> to vector<1x128xf32>
    %14 = vector.shape_cast %13 : vector<1x128xf32> to vector<1x1x128xf32>
    %cst_8 = arith.constant 8.000000e+00 : f32
    %15 = vector.broadcast %cst_8 : f32 to vector<1x1x128xf32>
    %16 = arith.divf %14, %15 : vector<1x1x128xf32>
    %17 = vector.broadcast %16 : vector<1x1x128xf32> to vector<1x8x128xf32>
    %18 = arith.mulf %10, %17 : vector<1x8x128xf32>
    %19 = vector.shape_cast %18 : vector<1x8x128xf32> to vector<8x128xf32>
    %20 = arith.mulf %10, %10 : vector<1x8x128xf32>
    %21 = vector.shape_cast %20 : vector<1x8x128xf32> to vector<8x128xf32>
    %22 = arith.mulf %16, %16 : vector<1x1x128xf32>
    %23 = vector.shape_cast %22 : vector<1x1x128xf32> to vector<1x128xf32>
    %24 = tpu.concatenate %19, %21, %23 in 0 : vector<8x128xf32>, vector<8x128xf32>, vector<1x128xf32> -> vector<17x128xf32>
    %c0_9 = arith.constant 0 : index
    %c0_10 = arith.constant 0 : index
    %25 = vector.load %arg4[%c0_9, %c0_10] : memref<128x128xf32, #tpu.memory_space<vmem>>, vector<128x128xf32>
    %cst_11 = arith.constant dense<0.000000e+00> : vector<17x128xf32>
    %26 = tpu.matmul %24, %25, %cst_11 {dimension_numbers = #tpu.dot_dimension_numbers<[1], [0], [0], [1], [0, 0, 1, 1], [], []>} : vector<17x128xf32>, vector<128x128xf32>, vector<17x128xf32> -> vector<17x128xf32>
    %27 = vector.extract_strided_slice %26 {offsets = [0, 0], sizes = [8, 128], strides = [1, 1]} : vector<17x128xf32> to vector<8x128xf32>
    %28 = vector.shape_cast %27 : vector<8x128xf32> to vector<1x8x128xf32>
    %29 = vector.extract_strided_slice %26 {offsets = [8, 0], sizes = [8, 128], strides = [1, 1]} : vector<17x128xf32> to vector<8x128xf32>
    %30 = vector.shape_cast %29 : vector<8x128xf32> to vector<1x8x128xf32>
    %31 = vector.extract_strided_slice %26 {offsets = [16, 0], sizes = [1, 128], strides = [1, 1]} : vector<17x128xf32> to vector<1x128xf32>
    %32 = vector.shape_cast %31 : vector<1x128xf32> to vector<1x1x128xf32>
    %33 = vector.broadcast %32 : vector<1x1x128xf32> to vector<1x8x128xf32>
    %34 = arith.mulf %30, %33 : vector<1x8x128xf32>
    %cst_12 = arith.constant 1.000000e-16 : f32
    %35 = vector.broadcast %cst_12 : f32 to vector<1x8x128xf32>
    %36 = arith.maximumf %34, %35 : vector<1x8x128xf32>
    %37 = math.rsqrt %36 : vector<1x8x128xf32>
    %38 = arith.mulf %28, %37 : vector<1x8x128xf32>
    %cst_13 = arith.constant 5.000000e-01 : f32
    %39 = vector.broadcast %cst_13 : f32 to vector<1x8x128xf32>
    %40 = arith.mulf %39, %38 : vector<1x8x128xf32>
    %41 = math.tanh %40 : vector<1x8x128xf32>
    %cst_14 = arith.constant 5.000000e-01 : f32
    %42 = vector.broadcast %cst_14 : f32 to vector<1x8x128xf32>
    %43 = arith.mulf %42, %41 : vector<1x8x128xf32>
    %cst_15 = arith.constant 5.000000e-01 : f32
    %44 = vector.broadcast %cst_15 : f32 to vector<1x8x128xf32>
    %45 = arith.addf %43, %44 : vector<1x8x128xf32>
    %46 = vector.broadcast %16 : vector<1x1x128xf32> to vector<1x8x128xf32>
    %47 = arith.mulf %45, %46 : vector<1x8x128xf32>
    %c0_16 = arith.constant 0 : index
    %c0_17 = arith.constant 0 : index
    %c0_18 = arith.constant 0 : index
    %48 = vector.load %arg5[%c0_16, %c0_17, %c0_18] : memref<1x8x128xf32, #tpu.memory_space<vmem>>, vector<1x8x128xf32>
    tpu.vector_store %arg5[%c0_16, %c0_17, %c0_18], %47 {strides = array<i32>} : memref<1x8x128xf32, #tpu.memory_space<vmem>>, vector<1x8x128xf32>,
    return
  }
  func.func @transform_0(%arg0: i32) -> (i32, i32, i32) {
    %c0_i32 = arith.constant 0 : i32
    %c0_i32_0 = arith.constant 0 : i32
    %c0_i32_1 = arith.constant 0 : i32
    return %arg0, %c0_i32, %c0_i32_0 : i32, i32, i32
  }
  func.func @transform_1(%arg0: i32) -> (i32, i32) {
    %c0_i32 = arith.constant 0 : i32
    %c0_i32_0 = arith.constant 0 : i32
    %c0_i32_1 = arith.constant 0 : i32
    return %c0_i32, %c0_i32_0 : i32, i32
  }
  func.func @transform_2(%arg0: i32) -> (i32, i32) {
    %c0_i32 = arith.constant 0 : i32
    %c0_i32_0 = arith.constant 0 : i32
    %c0_i32_1 = arith.constant 0 : i32
    return %c0_i32, %c0_i32_0 : i32, i32
  }
  func.func @transform_3(%arg0: i32) -> (i32, i32) {
    %c0_i32 = arith.constant 0 : i32
    %c0_i32_0 = arith.constant 0 : i32
    %c0_i32_1 = arith.constant 0 : i32
    return %c0_i32, %c0_i32_0 : i32, i32
  }
  func.func @transform_4(%arg0: i32) -> (i32, i32, i32) {
    %c0_i32 = arith.constant 0 : i32
    %c0_i32_0 = arith.constant 0 : i32
    %c0_i32_1 = arith.constant 0 : i32
    return %arg0, %c0_i32, %c0_i32_0 : i32, i32, i32
  }
}

module attributes {stable_mosaic.version = 11 : i64} {
  func.func @_lgsf_kernel(%arg0: i32, %arg1: memref<1x8x128xf32, #tpu.memory_space<vmem>>, %arg2: memref<128x256xf32, #tpu.memory_space<vmem>>, %arg3: memref<1x256xf32, #tpu.memory_space<vmem>>, %arg4: memref<128x128xf32, #tpu.memory_space<vmem>>, %arg5: memref<1x8x128xf32, #tpu.memory_space<vmem>>) attributes {dimension_semantics = [#tpu.dimension_semantics<parallel>], iteration_bounds = array<i64: 2>, scalar_prefetch = 0 : i64, scratch_operands = 0 : i64, tpu.core_type = #tpu.core_type<tc>, window_params = [{transform_indices = @transform_0, window_bounds = array<i64: 1, 8, 128>}, {pipeline_mode = #tpu.pipeline_mode<synchronous>, transform_indices = @transform_1, window_bounds = array<i64: 128, 256>}, {pipeline_mode = #tpu.pipeline_mode<synchronous>, transform_indices = @transform_2, window_bounds = array<i64: 1, 256>}, {pipeline_mode = #tpu.pipeline_mode<synchronous>, transform_indices = @transform_3, window_bounds = array<i64: 128, 128>}, {transform_indices = @transform_4, window_bounds = array<i64: 1, 8, 128>}]} {
    %c0 = arith.constant 0 : index
    %c0_0 = arith.constant 0 : index
    %c0_1 = arith.constant 0 : index
    %0 = vector.load %arg1[%c0, %c0_0, %c0_1] : memref<1x8x128xf32, #tpu.memory_space<vmem>>, vector<1x8x128xf32>
    %1 = vector.shape_cast %0 : vector<1x8x128xf32> to vector<8x128xf32>
    %c0_2 = arith.constant 0 : index
    %c0_3 = arith.constant 0 : index
    %2 = vector.load %arg2[%c0_2, %c0_3] : memref<128x256xf32, #tpu.memory_space<vmem>>, vector<128x256xf32>
    %cst = arith.constant dense<0.000000e+00> : vector<8x256xf32>
    %3 = tpu.matmul %1, %2, %cst {dimension_numbers = #tpu.dot_dimension_numbers<[1], [0], [0], [1], [0, 0, 1, 1], [], []>} : vector<8x128xf32>, vector<128x256xf32>, vector<8x256xf32> -> vector<8x256xf32>
    %c0_4 = arith.constant 0 : index
    %c0_5 = arith.constant 0 : index
    %4 = vector.load %arg3[%c0_4, %c0_5] : memref<1x256xf32, #tpu.memory_space<vmem>>, vector<1x256xf32>
    %5 = vector.broadcast %4 : vector<1x256xf32> to vector<8x256xf32>
    %6 = arith.addf %3, %5 : vector<8x256xf32>
    %cst_6 = arith.constant 0.000000e+00 : f32
    %7 = vector.broadcast %cst_6 : f32 to vector<8x256xf32>
    %8 = arith.maximumf %6, %7 : vector<8x256xf32>
    %9 = vector.extract_strided_slice %8 {offsets = [0, 0], sizes = [8, 128], strides = [1, 1]} : vector<8x256xf32> to vector<8x128xf32>
    %10 = vector.shape_cast %9 : vector<8x128xf32> to vector<1x8x128xf32>
    %11 = vector.extract_strided_slice %8 {offsets = [0, 128], sizes = [8, 128], strides = [1, 1]} : vector<8x256xf32> to vector<8x128xf32>
    %12 = vector.shape_cast %11 : vector<8x128xf32> to vector<1x8x128xf32>
    %cst_7 = arith.constant dense<0.000000e+00> : vector<1x128xf32>
    %13 = vector.multi_reduction <add>, %12, %cst_7 [1] : vector<1x8x128xf32> to vector<1x128xf32>
    %14 = vector.shape_cast %13 : vector<1x128xf32> to vector<1x1x128xf32>
    %cst_8 = arith.constant 8.000000e+00 : f32
    %15 = vector.broadcast %cst_8 : f32 to vector<1x1x128xf32>
    %16 = arith.divf %14, %15 : vector<1x1x128xf32>
    %17 = vector.broadcast %16 : vector<1x1x128xf32> to vector<1x8x128xf32>
    %18 = arith.mulf %10, %17 : vector<1x8x128xf32>
    %19 = vector.shape_cast %18 : vector<1x8x128xf32> to vector<8x128xf32>
    %20 = arith.mulf %10, %10 : vector<1x8x128xf32>
    %21 = vector.shape_cast %20 : vector<1x8x128xf32> to vector<8x128xf32>
    %22 = arith.mulf %16, %16 : vector<1x1x128xf32>
    %23 = vector.shape_cast %22 : vector<1x1x128xf32> to vector<1x128xf32>
    %24 = tpu.concatenate %19, %21, %23 in 0 : vector<8x128xf32>, vector<8x128xf32>, vector<1x128xf32> -> vector<17x128xf32>
    %c0_9 = arith.constant 0 : index
    %c0_10 = arith.constant 0 : index
    %25 = vector.load %arg4[%c0_9, %c0_10] : memref<128x128xf32, #tpu.memory_space<vmem>>, vector<128x128xf32>
    %cst_11 = arith.constant dense<0.000000e+00> : vector<17x128xf32>
    %26 = tpu.matmul %24, %25, %cst_11 {dimension_numbers = #tpu.dot_dimension_numbers<[1], [0], [0], [1], [0, 0, 1, 1], [], []>} : vector<17x128xf32>, vector<128x128xf32>, vector<17x128xf32> -> vector<17x128xf32>
    %27 = vector.extract_strided_slice %26 {offsets = [0, 0], sizes = [8, 128], strides = [1, 1]} : vector<17x128xf32> to vector<8x128xf32>
    %28 = vector.shape_cast %27 : vector<8x128xf32> to vector<1x8x128xf32>
    %29 = vector.extract_strided_slice %26 {offsets = [8, 0], sizes = [8, 128], strides = [1, 1]} : vector<17x128xf32> to vector<8x128xf32>
    %30 = vector.shape_cast %29 : vector<8x128xf32> to vector<1x8x128xf32>
    %31 = vector.extract_strided_slice %26 {offsets = [16, 0], sizes = [1, 128], strides = [1, 1]} : vector<17x128xf32> to vector<1x128xf32>
    %32 = vector.shape_cast %31 : vector<1x128xf32> to vector<1x1x128xf32>
    %33 = vector.broadcast %32 : vector<1x1x128xf32> to vector<1x8x128xf32>
    %34 = arith.mulf %30, %33 : vector<1x8x128xf32>
    %cst_12 = arith.constant 1.000000e-16 : f32
    %35 = vector.broadcast %cst_12 : f32 to vector<1x8x128xf32>
    %36 = arith.maximumf %34, %35 : vector<1x8x128xf32>
    %37 = math.rsqrt %36 : vector<1x8x128xf32>
    %38 = arith.mulf %28, %37 : vector<1x8x128xf32>
    %cst_13 = arith.constant 5.000000e-01 : f32
    %39 = vector.broadcast %cst_13 : f32 to vector<1x8x128xf32>
    %40 = arith.mulf %39, %38 : vector<1x8x128xf32>
    %41 = math.tanh %40 : vector<1x8x128xf32>
    %cst_14 = arith.constant 5.000000e-01 : f32
    %42 = vector.broadcast %cst_14 : f32 to vector<1x8x128xf32>
    %43 = arith.mulf %42, %41 : vector<1x8x128xf32>
    %cst_15 = arith.constant 5.000000e-01 : f32
    %44 = vector.broadcast %cst_15 : f32 to vector<1x8x128xf32>
    %45 = arith.addf %43, %44 : vector<1x8x128xf32>
    %46 = vector.broadcast %16 : vector<1x1x128xf32> to vector<1x8x128xf32>
    %47 = arith.mulf %45, %46 : vector<1x8x128xf32>
    %c0_16 = arith.constant 0 : index
    %c0_17 = arith.constant 0 : index
    %c0_18 = arith.constant 0 : index
    %48 = vector.load %arg5[%c0_16, %c0_17, %c0_18] : memref<1x8x128xf32, #tpu.memory_space<vmem>>, vector<1x8x128xf32>
    tpu.vector_store %arg5[%c0_16, %c0_17, %c0_18], %47 {strides = array<i32>} : memref<1x8x128xf32, #tpu.memory_space<vmem>>, vector<1x8x128xf32>,
    return
  }
  func.func @transform_0(%arg0: i32) -> (i32, i32, i32) {
    %c0_i32 = arith.constant 0 : i32
    %c0_i32_0 = arith.constant 0 : i32
    %c0_i32_1 = arith.constant 0 : i32
    return %arg0, %c0_i32, %c0_i32_0 : i32, i32, i32
  }
  func.func @transform_1(%arg0: i32) -> (i32, i32) {
    %c0_i32 = arith.constant 0 : i32
    %c0_i32_0 = arith.constant 0 : i32
    %c0_i32_1 = arith.constant 0 : i32
    return %c0_i32, %c0_i32_0 : i32, i32
  }
  func.func @transform_2(%arg0: i32) -> (i32, i32) {
    %c0_i32 = arith.constant 0 : i32
    %c0_i32_0 = arith.constant 0 : i32
    %c0_i32_1 = arith.constant 0 : i32
    return %c0_i32, %c0_i32_0 : i32, i32
  }
  func.func @transform_3(%arg0: i32) -> (i32, i32) {
    %c0_i32 = arith.constant 0 : i32
    %c0_i32_0 = arith.constant 0 : i32
    %c0_i32_1 = arith.constant 0 : i32
    return %c0_i32, %c0_i32_0 : i32, i32
  }
  func.func @transform_4(%arg0: i32) -> (i32, i32, i32) {
    %c0_i32 = arith.constant 0 : i32
    %c0_i32_0 = arith.constant 0 : i32
    %c0_i32_1 = arith.constant 0 : i32
    return %arg0, %c0_i32, %c0_i32_0 : i32, i32, i32
  }
}

</mosaic_0001>

<llo_original>
// kernel: tpu_custom_call.1
$region0: #{tpu_custom_call.1}
  #allocation0 [shape = 'u32[]', space=smem, size = 0x4, offset = 0x4, fixed_abs, tag = 'smem constant byte address 0x4 - core index']
  #allocation1 [shape = 'u32[144,128]{1,0:T(1,128)}', space=vmem, size = 0x12000, scoped, tag = 'internal scratch']
  %s0 = inlined_call_operand.hbm [shape: f32[2,8,128], index: 0, kind: input, shape index: {}]
  %s1 = inlined_call_operand.hbm [shape: f32[128,256], index: 1, kind: input, shape index: {}]
  %s2 = inlined_call_operand.vmem [shape: f32[1,256], index: 2, kind: input, shape index: {}]
  %s3 = inlined_call_operand.hbm [shape: f32[128,128], index: 3, kind: input, shape index: {}]
  %s4 = inlined_call_operand.hbm [shape: f32[2,8,128], index: 4, kind: output, shape index: {}]
  %s5 = sld [smem:[#allocation0]]
  $region61: #{tpu_custom_call.1} parent=0
    _
  %s7 = ssub.s32 1, %s5
  %s8 = scalar_select 0, %s7, %s5
  $region1: #{tpu_custom_call.1} parent=0
    #allocation2 [shape = 'u8[8192]{0}', space=vmem, size = 0x2000, scoped, tag = 'input window, operand 0']
    #allocation3 [shape = 's32[2]{0}', space=sflag, size = 0x8, scoped, tag = 'scoped memory for tpu_custom_call.1']
    #allocation4 [shape = 's32[2]{0}', space=sflag, size = 0x8, scoped, tag = 'scoped memory for tpu_custom_call.1']
    #allocation5 [shape = 'u8[131072]{0}', space=vmem, size = 0x20000, scoped, tag = 'input window, operand 1, single buffered']
    #allocation6 [shape = 's32[1]{0}', space=sflag, size = 0x4, scoped, tag = 'scoped memory for tpu_custom_call.1']
    #allocation7 [shape = 'u8[65536]{0}', space=vmem, size = 0x10000, scoped, tag = 'input window, operand 3, single buffered']
    #allocation8 [shape = 'u8[8192]{0}', space=vmem, size = 0x2000, scoped, tag = 'output window, operand 0']
    %9 = vsyncpa [#allocation3], 0
    %s10 = scalar_lea.sflag [#allocation3], 1
    %11 = vsyncpa %s10, 0
    %12 = vsyncpa [#allocation6], 0
    %13 = vsyncpa [#allocation4], 0
    %s14 = scalar_lea.sflag [#allocation4], 1
    %15 = vsyncpa %s14, 0
    loop: start=0, step=1, limit=4
    $region2: #{tpu_custom_call.1} parent=1 // loop_pre_header
      _
    $region3: #{tpu_custom_call.1} parent=1 // loop_header
      %s17 = sphi 0, %s21
      %p18 = scmp.ge.s32.totalorder %s17, 4
      %s27 = sphi 0, %s29
      %s30 = sphi 0, %s27
      %s31 = sphi 0, %s30
      %s47 = sphi 0, %s31
      %s51 = sphi 0, %s51
      %s53 = sphi 0, %s51
      %s54 = sphi 0, %s53
      %s68 = sphi 0, %s54
      %s72 = sphi 0, %s72
      %s74 = sphi 0, %s72
      %s75 = sphi 0, %s74
      %s89 = sphi 0, %s75
      %s93 = sphi 0, %s93
      %s95 = sphi 0, %s93
      %s96 = sphi 0, %s95
      %s110 = sphi 0, %s96
      %s116 = sphi 0, %s118
      %s119 = sphi 0, %s116
      %s120 = sphi 0, %s119
      %s136 = sphi 0, %s120
    $region4: #{tpu_custom_call.1} parent=1 // loop_header_branch
      %20 = sbr.rel (%p18) target = $region8
    $region5: #{tpu_custom_call.1} parent=1 // loop_body
      %s22 = ssub.s32 %s17, 1
      %s23 = ssub.s32 %s17, 2
      %s24 = sadd.s32 %s17, 1
      %s25 = ssub.s32 %s17, %s24
      %p26 = scmp.eq.s32.totalorder %s25, 0
      %s28 = sadd.s32 %s27, 1
      %s29 = scalar_select %p26, %s27, %s28
      %p32 = pneg %p26
      %p33 = scmp.eq.s32.totalorder %s17, 1
      %p34 = por %p32, %p33
      %p35 = scmp.ne.s32.totalorder %s27, %s30
      %p36 = scmp.eq.s32.totalorder %s17, 0
      %p37 = por %p35, %p36
      %p38 = scmp.ne.s32.totalorder %s27, %s30
      %p39 = scmp.eq.s32.totalorder %s22, 1
      %p40 = por %p38, %p39
      %p41 = scmp.ne.s32.totalorder %s30, %s31
      %p42 = scmp.eq.s32.totalorder %s22, 0
      %p43 = por %p41, %p42
      %p44 = scmp.ne.s32.totalorder %s30, %s31
      %p45 = scmp.eq.s32.totalorder %s23, 1
      %p46 = por %p44, %p45
      %p48 = scmp.ne.s32.totalorder %s31, %s47
      %p49 = scmp.eq.s32.totalorder %s23, 0
      %p50 = por %p48, %p49
      %s52 = sadd.s32 %s51, 1
      %p55 = scmp.eq.s32.totalorder %s17, 1
      %p56 = scmp.ne.s32.totalorder %s51, %s53
      %p57 = scmp.eq.s32.totalorder %s17, 0
      %p58 = por %p56, %p57
      %p59 = scmp.ne.s32.totalorder %s51, %s53
      %p60 = scmp.eq.s32.totalorder %s22, 1
      %p61 = por %p59, %p60
      %p62 = scmp.ne.s32.totalorder %s53, %s54
      %p63 = scmp.eq.s32.totalorder %s22, 0
      %p64 = por %p62, %p63
      %p65 = scmp.ne.s32.totalorder %s53, %s54
      %p66 = scmp.eq.s32.totalorder %s23, 1
      %p67 = por %p65, %p66
      %p69 = scmp.ne.s32.totalorder %s54, %s68
      %p70 = scmp.eq.s32.totalorder %s23, 0
      %p71 = por %p69, %p70
      %s73 = sadd.s32 %s72, 1
      %p76 = scmp.eq.s32.totalorder %s17, 1
      %p77 = scmp.ne.s32.totalorder %s72, %s74
      %p78 = scmp.eq.s32.totalorder %s17, 0
      %p79 = por %p77, %p78
      %p80 = scmp.ne.s32.totalorder %s72, %s74
      %p81 = scmp.eq.s32.totalorder %s22, 1
      %p82 = por %p80, %p81
      %p83 = scmp.ne.s32.totalorder %s74, %s75
      %p84 = scmp.eq.s32.totalorder %s22, 0
      %p85 = por %p83, %p84
      %p86 = scmp.ne.s32.totalorder %s74, %s75
      %p87 = scmp.eq.s32.totalorder %s23, 1
      %p88 = por %p86, %p87
      %p90 = scmp.ne.s32.totalorder %s75, %s89
      %p91 = scmp.eq.s32.totalorder %s23, 0
      %p92 = por %p90, %p91
      %s94 = sadd.s32 %s93, 1
      %p97 = scmp.eq.s32.totalorder %s17, 1
      %p98 = scmp.ne.s32.totalorder %s93, %s95
      %p99 = scmp.eq.s32.totalorder %s17, 0
      %p100 = por %p98, %p99
      %p101 = scmp.ne.s32.totalorder %s93, %s95
      %p102 = scmp.eq.s32.totalorder %s22, 1
      %p103 = por %p101, %p102
      %p104 = scmp.ne.s32.totalorder %s95, %s96
      %p105 = scmp.eq.s32.totalorder %s22, 0
      %p106 = por %p104, %p105
      %p107 = scmp.ne.s32.totalorder %s95, %s96
      %p108 = scmp.eq.s32.totalorder %s23, 1
      %p109 = por %p107, %p108
      %p111 = scmp.ne.s32.totalorder %s96, %s110
      %p112 = scmp.eq.s32.totalorder %s23, 0
      %p113 = por %p111, %p112
      %s114 = ssub.s32 %s17, %s24
      %p115 = scmp.eq.s32.totalorder %s114, 0
      %s117 = sadd.s32 %s116, 1
      %s118 = scalar_select %p115, %s116, %s117
      %p121 = pneg %p115
      %p122 = scmp.eq.s32.totalorder %s17, 1
      %p123 = por %p121, %p122
      %p124 = scmp.ne.s32.totalorder %s116, %s119
      %p125 = scmp.eq.s32.totalorder %s17, 0
      %p126 = por %p124, %p125
      %p127 = scmp.ne.s32.totalorder %s116, %s119
      %p128 = scmp.eq.s32.totalorder %s22, 1
      %p129 = por %p127, %p128
      %p130 = scmp.ne.s32.totalorder %s119, %s120
      %p131 = scmp.eq.s32.totalorder %s22, 0
      %p132 = por %p130, %p131
      %p133 = scmp.ne.s32.totalorder %s119, %s120
      %p134 = scmp.eq.s32.totalorder %s23, 1
      %p135 = por %p133, %p134
      %p137 = scmp.ne.s32.totalorder %s120, %s136
      %p138 = scmp.eq.s32.totalorder %s23, 0
      %p139 = por %p137, %p138
      %p140 = scmp.le.s32.totalorder 1, %s17
      %p141 = scmp.lt.s32.totalorder %s17, 3
      %p142 = pnand %p140, %p141
      %p143 = pneg %p142
      // Predicated region
      $region9: #{tpu_custom_call.1} parent=5 // pred_check
        _
      $region10: #{tpu_custom_call.1} parent=5 // pred_check_branch
        %145 = sbr.rel (%p142) target = $region12
      $region11: #{tpu_custom_call.1} parent=5 // pred_region
        %s146 = ssub.s32 %s17, 1
        // Predicated region
        $region13: #{tpu_custom_call.1} parent=11 // pred_check
          %p147 = pneg %p64
        $region14: #{tpu_custom_call.1} parent=11 // pred_check_branch
          %149 = sbr.rel (%p147) target = $region16
        $region15: #{tpu_custom_call.1} parent=11 // pred_region
          %s151 = ssub.s32 4096, 4096
          %152 = vsyncadd [#allocation6], %s151
          %s153 = sshll.u32 [#allocation5], 4
          %s154 = int_to_ptr.vmem [resolvable:$true] %s153
          %159 = dma.hbm_to_vmem [thread:$0]  %s1, 4096, %s154, [#allocation6], 256, 256, 16
        $region16: #{tpu_custom_call.1} parent=11 // pred_fallthru
          _
        // Predicated region
        $region17: #{tpu_custom_call.1} parent=11 // pred_check
          %p160 = pneg %p85
        $region18: #{tpu_custom_call.1} parent=11 // pred_check_branch
          %162 = sbr.rel (%p160) target = $region20
        $region19: #{tpu_custom_call.1} parent=11 // pred_region
          _
        $region20: #{tpu_custom_call.1} parent=11 // pred_fallthru
          _
        // Predicated region
        $region21: #{tpu_custom_call.1} parent=11 // pred_check
          %p163 = pneg %p106
        $region22: #{tpu_custom_call.1} parent=11 // pred_check_branch
          %165 = sbr.rel (%p163) target = $region24
        $region23: #{tpu_custom_call.1} parent=11 // pred_region
          %s167 = ssub.s32 2048, 2048
          %168 = vsyncadd [#allocation6], %s167
          %s169 = sshll.u32 [#allocation7], 4
          %s170 = int_to_ptr.vmem [resolvable:$true] %s169
          %175 = dma.hbm_to_vmem [thread:$0]  %s3, 2048, %s170, [#allocation6], 128, 128, 8
        $region24: #{tpu_custom_call.1} parent=11 // pred_fallthru
          _
      $region12: #{tpu_custom_call.1} parent=5 // pred_fallthru
        _
      %p176 = scmp.lt.s32.totalorder %s17, 2
      // Predicated region
      $region25: #{tpu_custom_call.1} parent=5 // pred_check
        %p177 = pneg %p176
      $region26: #{tpu_custom_call.1} parent=5 // pred_check_branch
        %179 = sbr.rel (%p177) target = $region28
      $region27: #{tpu_custom_call.1} parent=5 // pred_region
        // Predicated region
        $region29: #{tpu_custom_call.1} parent=27 // pred_check
          %p180 = pneg %p37
        $region30: #{tpu_custom_call.1} parent=27 // pred_check_branch
          %182 = sbr.rel (%p180) target = $region32
        $region31: #{tpu_custom_call.1} parent=27 // pred_region
          %s183 = sand.u32 %s27, 1
          %s184 = scalar_lea.sflag [#allocation3], %s183
          %s185 = sand.u32 %s27, 1
          %s186 = smul.addr %s185, 8
          %s187 = scalar_lea.vmem [#allocation2], %s186
          %s189 = ssub.s32 128, 128
          %190 = vsyncadd %s184, %s189
          %s191 = smul.addr %s17, 128
          %s192 = scalar_lea.hbm %s0, %s191
          %s194 = sshll.u32 %s187, 4
          %s195 = int_to_ptr.vmem [resolvable:$true] %s194
          %197 = dma.hbm_to_vmem [thread:$0]  %s192, 128, %s195, %s184
        $region32: #{tpu_custom_call.1} parent=27 // pred_fallthru
          _
      $region28: #{tpu_custom_call.1} parent=5 // pred_fallthru
        _
      %p198 = scmp.le.s32.totalorder 1, %s17
      %p199 = scmp.lt.s32.totalorder %s17, 3
      %p200 = pnand %p198, %p199
      %p201 = pneg %p200
      // Predicated region
      $region33: #{tpu_custom_call.1} parent=5 // pred_check
        _
      $region34: #{tpu_custom_call.1} parent=5 // pred_check_branch
        %203 = sbr.rel (%p200) target = $region36
      $region35: #{tpu_custom_call.1} parent=5 // pred_region
        %s204 = ssub.s32 %s17, 1
        %s205 = sand.u32 %s30, 1
        %s206 = scalar_lea.sflag [#allocation3], %s205
        %s207 = sand.u32 %s30, 1
        %s208 = smul.addr %s207, 8
        %s209 = scalar_lea.vmem [#allocation2], %s208
        // Predicated region
        $region37: #{tpu_custom_call.1} parent=35 // pred_check
          %p210 = pneg %p43
        $region38: #{tpu_custom_call.1} parent=35 // pred_check_branch
          %212 = sbr.rel (%p210) target = $region40
        $region39: #{tpu_custom_call.1} parent=35 // pred_region
          %213 = dma.done %s206, 128
        $region40: #{tpu_custom_call.1} parent=35 // pred_fallthru
          _
        // Predicated region
        $region41: #{tpu_custom_call.1} parent=35 // pred_check
          %p214 = pneg %p64
        $region42: #{tpu_custom_call.1} parent=35 // pred_check_branch
          %216 = sbr.rel (%p214) target = $region44
        $region43: #{tpu_custom_call.1} parent=35 // pred_region
          %217 = dma.done [#allocation6], 4096
        $region44: #{tpu_custom_call.1} parent=35 // pred_fallthru
          _
        // Predicated region
        $region45: #{tpu_custom_call.1} parent=35 // pred_check
          %p218 = pneg %p106
        $region46: #{tpu_custom_call.1} parent=35 // pred_check_branch
          %220 = sbr.rel (%p218) target = $region48
        $region47: #{tpu_custom_call.1} parent=35 // pred_region
          %221 = dma.done [#allocation6], 2048
        $region48: #{tpu_custom_call.1} parent=35 // pred_fallthru
          _
        %s222 = sand.u32 %s30, 1
        %s223 = scalar_lea.sflag [#allocation3], %s222
        %s224 = sand.u32 %s30, 1
        %s225 = smul.addr %s224, 8
        %s226 = scalar_lea.vmem [#allocation2], %s225
        %p227 = pneg %p43
        %p228 = pneg %p40
        %p229 = pneg %p64
        %p230 = pneg %p61
        %p231 = pneg %p85
        %p232 = pneg %p82
        %p233 = pneg %p106
        %p234 = pneg %p103
        %p235 = pneg %p132
        %p236 = pneg %p129
        %s237 = sand.u32 %s119, 1
        %s238 = scalar_lea.sflag [#allocation4], %s237
        %s239 = sand.u32 %s119, 1
        %s240 = smul.addr %s239, 8
        %s241 = scalar_lea.vmem [#allocation8], %s240
        %v242 = vld [vmem:[%s209] sm:$0xff]
        %v243 = vld [vmem:[#allocation5] sm:$0xff]
        %v244 = vld [vmem:[#allocation5 + $0x8] sm:$0xff]
        %v245 = vld [vmem:[#allocation5 + $0x10] sm:$0xff]
        %v246 = vld [vmem:[#allocation5 + $0x18] sm:$0xff]
        %v247 = vld [vmem:[#allocation5 + $0x20] sm:$0xff]
        %v248 = vld [vmem:[#allocation5 + $0x28] sm:$0xff]
        %v249 = vld [vmem:[#allocation5 + $0x30] sm:$0xff]
        %v250 = vld [vmem:[#allocation5 + $0x38] sm:$0xff]
        %v251 = vld [vmem:[#allocation5 + $0x40] sm:$0xff]
        %v252 = vld [vmem:[#allocation5 + $0x48] sm:$0xff]
        %v253 = vld [vmem:[#allocation5 + $0x50] sm:$0xff]
        %v254 = vld [vmem:[#allocation5 + $0x58] sm:$0xff]
        %v255 = vld [vmem:[#allocation5 + $0x60] sm:$0xff]
        %v256 = vld [vmem:[#allocation5 + $0x68] sm:$0xff]
        %v257 = vld [vmem:[#allocation5 + $0x70] sm:$0xff]
        %v258 = vld [vmem:[#allocation5 + $0x78] sm:$0xff]
        %v259 = vld [vmem:[#allocation5 + $0x80] sm:$0xff]
        %v260 = vld [vmem:[#allocation5 + $0x88] sm:$0xff]
        %v261 = vld [vmem:[#allocation5 + $0x90] sm:$0xff]
        %v262 = vld [vmem:[#allocation5 + $0x98] sm:$0xff]
        %v263 = vld [vmem:[#allocation5 + $0xa0] sm:$0xff]
        %v264 = vld [vmem:[#allocation5 + $0xa8] sm:$0xff]
        %v265 = vld [vmem:[#allocation5 + $0xb0] sm:$0xff]
        %v266 = vld [vmem:[#allocation5 + $0xb8] sm:$0xff]
        %v267 = vld [vmem:[#allocation5 + $0xc0] sm:$0xff]
        %v268 = vld [vmem:[#allocation5 + $0xc8] sm:$0xff]
        %v269 = vld [vmem:[#allocation5 + $0xd0] sm:$0xff]
        %v270 = vld [vmem:[#allocation5 + $0xd8] sm:$0xff]
        %v271 = vld [vmem:[#allocation5 + $0xe0] sm:$0xff]
        %v272 = vld [vmem:[#allocation5 + $0xe8] sm:$0xff]
        %v273 = vld [vmem:[#allocation5 + $0xf0] sm:$0xff]
        %v274 = vld [vmem:[#allocation5 + $0xf8] sm:$0xff]
        %v275 = vld [vmem:[%s2] sm:$0x3]
        %v277 = vlaneseq
        %v278 = vshrl.u32 %v277, 7
        %v279 = vsub.s32 0, %v278
        %v280 = vrot.slane %v275, %v279
        %v281 = vlaneseq
        %v282 = vshrl.u32 %v281, 7
        %v283 = vsub.s32 1, %v282
        %v284 = vrot.slane %v275, %v283
        %287 = vmatprep.subr.mxu0 %v244
        %288 = vmatpush1.msra.mxu0 %v243
        %289 = vmatprep.subr.mxu0 %v246
        %290 = vmatpush1.msra.mxu0 %v245
        %291 = vmatprep.subr.mxu0 %v248
        %292 = vmatpush1.msra.mxu0 %v247
        %293 = vmatprep.subr.mxu0 %v250
        %294 = vmatpush1.msra.mxu0 %v249
        %295 = vmatprep.subr.mxu0 %v252
        %296 = vmatpush1.msra.mxu0 %v251
        %297 = vmatprep.subr.mxu0 %v254
        %298 = vmatpush1.msra.mxu0 %v253
        %299 = vmatprep.subr.mxu0 %v256
        %300 = vmatpush1.msra.mxu0 %v255
        %301 = vmatprep.subr.mxu0 %v258
        %302 = vmatpush1.msra.mxu0 %v257
        %303 = vmatprep.subr.mxu0 %v260
        %304 = vmatpush1.msra.mxu0 %v259
        %305 = vmatprep.subr.mxu0 %v262
        %306 = vmatpush1.msra.mxu0 %v261
        %307 = vmatprep.subr.mxu0 %v264
        %308 = vmatpush1.msra.mxu0 %v263
        %309 = vmatprep.subr.mxu0 %v266
        %310 = vmatpush1.msra.mxu0 %v265
        %311 = vmatprep.subr.mxu0 %v268
        %312 = vmatpush1.msra.mxu0 %v267
        %313 = vmatprep.subr.mxu0 %v270
        %314 = vmatpush1.msra.mxu0 %v269
        %315 = vmatprep.subr.mxu0 %v272
        %316 = vmatpush1.msra.mxu0 %v271
        %317 = vmatprep.subr.mxu0 %v274
        %318 = vmatpush1.msra.mxu0 %v273
        %319 = vmatprep.subr.mxu0 0.0
        %320 = vmatpush1.msra.mxu0 0.0
        %321 = vmatprep.subr.mxu0 0.0
        %322 = vmatpush1.msra.mxu0 0.0
        %323 = vmatprep.subr.mxu0 0.0
        %324 = vmatpush1.msra.mxu0 0.0
        %325 = vmatprep.subr.mxu0 0.0
        %326 = vmatpush1.msra.mxu0 0.0
        %327 = vmatprep.subr.mxu0 0.0
        %328 = vmatpush1.msra.mxu0 0.0
        %329 = vmatprep.subr.mxu0 0.0
        %330 = vmatpush1.msra.mxu0 0.0
        %331 = vmatprep.subr.mxu0 0.0
        %332 = vmatpush1.msra.mxu0 0.0
        %333 = vmatprep.subr.mxu0 0.0
        %334 = vmatpush1.msra.mxu0 0.0
        %335 = vmatprep.subr.mxu0 0.0
        %336 = vmatpush1.msra.mxu0 0.0
        %337 = vmatprep.subr.mxu0 0.0
        %338 = vmatpush1.msra.mxu0 0.0
        %339 = vmatprep.subr.mxu0 0.0
        %340 = vmatpush1.msra.mxu0 0.0
        %341 = vmatprep.subr.mxu0 0.0
        %342 = vmatpush1.msra.mxu0 0.0
        %343 = vmatprep.subr.mxu0 0.0
        %344 = vmatpush1.msra.mxu0 0.0
        %345 = vmatprep.subr.mxu0 0.0
        %346 = vmatpush1.msra.mxu0 0.0
        %347 = vmatprep.subr.mxu0 0.0
        %348 = vmatpush1.msra.mxu0 0.0
        %349 = vmatprep.subr.mxu0 0.0
        %350 = vmatpush1.msra.mxu0 0.0
        %351 = vmatprep.mubr.f32.mxu0 0.0
        %352 = vmatmul.mubr.f32.gmra.mrb[0].mxu0 %v242
        %v353 = vpop.f32.mrb[0].mxu0
        %v354 = vadd.f32 %v280, %v353
        %v355 = vpop.f32.mrb[0].mxu0
        %v356 = vadd.f32 %v284, %v355
        %357 = vdwg.mxu0
        %v358 = vmax.f32 %v354, 0.0
        %v359 = vmax.f32 %v356, 0.0
        %v360 = vrot.slane %v359, 4
        %v361 = vadd.f32 %v359, %v360
        %v362 = vrot.slane %v361, 2
        %v363 = vadd.f32 %v361, %v362
        %v364 = vrot.slane %v363, 1
        %v365 = vadd.f32 %v363, %v364
        %v366 = vrcp.pop 8.0
        %v367 = vmul.f32 %v365, %v366
        %v368 = vmul.f32 %v358, %v367
        %v369 = vmul.f32 %v358, %v358
        %v370 = vmul.f32 %v367, %v367
        %v371 = vld [vmem:[#allocation7] sm:$0xff]
        %v372 = vld [vmem:[#allocation7 + $0x8] sm:$0xff]
        %v373 = vld [vmem:[#allocation7 + $0x10] sm:$0xff]
        %v374 = vld [vmem:[#allocation7 + $0x18] sm:$0xff]
        %v375 = vld [vmem:[#allocation7 + $0x20] sm:$0xff]
        %v376 = vld [vmem:[#allocation7 + $0x28] sm:$0xff]
        %v377 = vld [vmem:[#allocation7 + $0x30] sm:$0xff]
        %v378 = vld [vmem:[#allocation7 + $0x38] sm:$0xff]
        %v379 = vld [vmem:[#allocation7 + $0x40] sm:$0xff]
        %v380 = vld [vmem:[#allocation7 + $0x48] sm:$0xff]
        %v381 = vld [vmem:[#allocation7 + $0x50] sm:$0xff]
        %v382 = vld [vmem:[#allocation7 + $0x58] sm:$0xff]
        %v383 = vld [vmem:[#allocation7 + $0x60] sm:$0xff]
        %v384 = vld [vmem:[#allocation7 + $0x68] sm:$0xff]
        %v385 = vld [vmem:[#allocation7 + $0x70] sm:$0xff]
        %v386 = vld [vmem:[#allocation7 + $0x78] sm:$0xff]
        %387 = vmatprep.subr.mxu0 0.0
        %388 = vmatpush1.msra.mxu0 %v371
        %389 = vmatprep.subr.mxu0 0.0
        %390 = vmatpush1.msra.mxu0 %v372
        %391 = vmatprep.subr.mxu0 0.0
        %392 = vmatpush1.msra.mxu0 %v373
        %393 = vmatprep.subr.mxu0 0.0
        %394 = vmatpush1.msra.mxu0 %v374
        %395 = vmatprep.subr.mxu0 0.0
        %396 = vmatpush1.msra.mxu0 %v375
        %397 = vmatprep.subr.mxu0 0.0
        %398 = vmatpush1.msra.mxu0 %v376
        %399 = vmatprep.subr.mxu0 0.0
        %400 = vmatpush1.msra.mxu0 %v377
        %401 = vmatprep.subr.mxu0 0.0
        %402 = vmatpush1.msra.mxu0 %v378
        %403 = vmatprep.subr.mxu0 0.0
        %404 = vmatpush1.msra.mxu0 %v379
        %405 = vmatprep.subr.mxu0 0.0
        %406 = vmatpush1.msra.mxu0 %v380
        %407 = vmatprep.subr.mxu0 0.0
        %408 = vmatpush1.msra.mxu0 %v381
        %409 = vmatprep.subr.mxu0 0.0
        %410 = vmatpush1.msra.mxu0 %v382
        %411 = vmatprep.subr.mxu0 0.0
        %412 = vmatpush1.msra.mxu0 %v383
        %413 = vmatprep.subr.mxu0 0.0
        %414 = vmatpush1.msra.mxu0 %v384
        %415 = vmatprep.subr.mxu0 0.0
        %416 = vmatpush1.msra.mxu0 %v385
        %417 = vmatprep.subr.mxu0 0.0
        %418 = vmatpush1.msra.mxu0 %v386
        %419 = vmatprep.subr.mxu0 0.0
        %420 = vmatpush1.msra.mxu0 0.0
        %421 = vmatprep.subr.mxu0 0.0
        %422 = vmatpush1.msra.mxu0 0.0
        %423 = vmatprep.subr.mxu0 0.0
        %424 = vmatpush1.msra.mxu0 0.0
        %425 = vmatprep.subr.mxu0 0.0
        %426 = vmatpush1.msra.mxu0 0.0
        %427 = vmatprep.subr.mxu0 0.0
        %428 = vmatpush1.msra.mxu0 0.0
        %429 = vmatprep.subr.mxu0 0.0
        %430 = vmatpush1.msra.mxu0 0.0
        %431 = vmatprep.subr.mxu0 0.0
        %432 = vmatpush1.msra.mxu0 0.0
        %433 = vmatprep.subr.mxu0 0.0
        %434 = vmatpush1.msra.mxu0 0.0
        %435 = vmatprep.subr.mxu0 0.0
        %436 = vmatpush1.msra.mxu0 0.0
        %437 = vmatprep.subr.mxu0 0.0
        %438 = vmatpush1.msra.mxu0 0.0
        %439 = vmatprep.subr.mxu0 0.0
        %440 = vmatpush1.msra.mxu0 0.0
        %441 = vmatprep.subr.mxu0 0.0
        %442 = vmatpush1.msra.mxu0 0.0
        %443 = vmatprep.subr.mxu0 0.0
        %444 = vmatpush1.msra.mxu0 0.0
        %445 = vmatprep.subr.mxu0 0.0
        %446 = vmatpush1.msra.mxu0 0.0
        %447 = vmatprep.subr.mxu0 0.0
        %448 = vmatpush1.msra.mxu0 0.0
        %449 = vmatprep.subr.mxu0 0.0
        %450 = vmatpush1.msra.mxu0 0.0
        %451 = vmatprep.mubr.f32.mxu0 0.0
        %452 = vmatmul.mubr.f32.gmra.mrb[0].mxu0 %v368
        %v453 = vpop.f32.mrb[0].mxu0
        %v454 = vadd.f32 0.0, %v453
        %v455 = vpop.f32.mrb[0].mxu0
        %456 = vmatprep.mubr.f32.mxu0 0.0
        %457 = vmatmul.mubr.f32.gmra.mrb[0].mxu0 %v369
        %v458 = vpop.f32.mrb[0].mxu0
        %v459 = vadd.f32 0.0, %v458
        %v460 = vpop.f32.mrb[0].mxu0
        %461 = vmatprep.mubr.f32.mxu0 0.0
        %462 = vmatmul.mubr.f32.gmra.mrb[0].mxu0 %v370
        %v463 = vpop.f32.mrb[0].mxu0
        %v464 = vadd.f32 0.0, %v463
        %v465 = vpop.f32.mrb[0].mxu0
        %466 = vdwg.mxu0
        %v467 = vlaneseq
        %v468 = vshrl.u32 %v467, 7
        %v469 = vsub.s32 0, %v468
        %v470 = vrot.slane %v464, %v469
        %v471 = vmul.f32 %v459, %v470
        %v472 = vmax.f32 %v471, 1e-16
        %v473 = vrsqrt.pop %v472
        %v474 = vmul.f32 %v454, %v473
        %v475 = vmul.f32 %v474, 0.5
        %v476 = vtanh.pop %v475
        %v477 = vmul.f32 %v476, 0.5
        %v478 = vadd.f32 %v477, 0.5
        %v479 = vmul.f32 %v478, %v367
        %480 = vst [vmem:[%s241] sm:$0xff] %v479
        %s481 = sand.u32 %s119, 1
        %s482 = scalar_lea.sflag [#allocation4], %s481
        %s483 = sand.u32 %s119, 1
        %s484 = smul.addr %s483, 8
        %s485 = scalar_lea.vmem [#allocation8], %s484
        // Predicated region
        $region49: #{tpu_custom_call.1} parent=35 // pred_check
          %p486 = pneg %p129
        $region50: #{tpu_custom_call.1} parent=35 // pred_check_branch
          %488 = sbr.rel (%p486) target = $region52
        $region51: #{tpu_custom_call.1} parent=35 // pred_region
          %s490 = ssub.s32 128, 128
          %491 = vsyncadd %s482, %s490
          %s492 = smul.addr %s22, 128
          %s493 = scalar_lea.hbm %s4, %s492
          %s495 = sshll.u32 %s485, 4
          %s496 = int_to_ptr.vmem [resolvable:$true] %s495
          %498 = dma.vmem_to_hbm [thread:$0]  %s496, 128, %s493, %s482
        $region52: #{tpu_custom_call.1} parent=35 // pred_fallthru
          _
      $region36: #{tpu_custom_call.1} parent=5 // pred_fallthru
        _
      %p499 = scmp.le.s32.totalorder 2, %s17
      // Predicated region
      $region53: #{tpu_custom_call.1} parent=5 // pred_check
        %p500 = pneg %p499
      $region54: #{tpu_custom_call.1} parent=5 // pred_check_branch
        %502 = sbr.rel (%p500) target = $region56
      $region55: #{tpu_custom_call.1} parent=5 // pred_region
        %s503 = ssub.s32 %s17, 2
        // Predicated region
        $region57: #{tpu_custom_call.1} parent=55 // pred_check
          %p504 = pneg %p135
        $region58: #{tpu_custom_call.1} parent=55 // pred_check_branch
          %506 = sbr.rel (%p504) target = $region60
        $region59: #{tpu_custom_call.1} parent=55 // pred_region
          %s507 = sand.u32 %s120, 1
          %s508 = scalar_lea.sflag [#allocation4], %s507
          %s509 = sand.u32 %s120, 1
          %s510 = smul.addr %s509, 8
          %s511 = scalar_lea.vmem [#allocation8], %s510
          %512 = dma.done %s508, 128
        $region60: #{tpu_custom_call.1} parent=55 // pred_fallthru
          _
      $region56: #{tpu_custom_call.1} parent=5 // pred_fallthru
        _
    $region6: #{tpu_custom_call.1} parent=1 // loop_footer
      %s21 = sadd.s32 1, %s17
    $region7: #{tpu_custom_call.1} parent=1 // loop_footer_branch
      %16 = sbr.rel target = $region3
    $region8: #{tpu_custom_call.1} parent=1 // loop_exit
      _
    %513 = vsyncpa [#allocation3], 1
    %s514 = scalar_lea.sflag [#allocation3], 1
    %515 = vsyncpa %s514, 1
    %516 = vsyncpa [#allocation6], 1
    %517 = vsyncpa [#allocation4], 1
    %s518 = scalar_lea.sflag [#allocation4], 1
    %519 = vsyncpa %s518, 1

// kernel: tpu_custom_call.1
$region0: #{tpu_custom_call.1}
  #allocation0 [shape = 'u32[]', space=smem, size = 0x4, offset = 0x4, fixed_abs, tag = 'smem constant byte address 0x4 - core index']
  #allocation1 [shape = 'u32[144,128]{1,0:T(1,128)}', space=vmem, size = 0x12000, scoped, tag = 'internal scratch']
  %s0 = inlined_call_operand.hbm [shape: f32[2,8,128], index: 0, kind: input, shape index: {}]
  %s1 = inlined_call_operand.hbm [shape: f32[128,256], index: 1, kind: input, shape index: {}]
  %s2 = inlined_call_operand.vmem [shape: f32[1,256], index: 2, kind: input, shape index: {}]
  %s3 = inlined_call_operand.hbm [shape: f32[128,128], index: 3, kind: input, shape index: {}]
  %s4 = inlined_call_operand.hbm [shape: f32[2,8,128], index: 4, kind: output, shape index: {}]
  %s5 = sld [smem:[#allocation0]]
  $region61: #{tpu_custom_call.1} parent=0
    _
  %s7 = ssub.s32 1, %s5
  %s8 = scalar_select 0, %s7, %s5
  $region1: #{tpu_custom_call.1} parent=0
    #allocation2 [shape = 'u8[8192]{0}', space=vmem, size = 0x2000, scoped, tag = 'input window, operand 0']
    #allocation3 [shape = 's32[2]{0}', space=sflag, size = 0x8, scoped, tag = 'scoped memory for tpu_custom_call.1']
    #allocation4 [shape = 's32[2]{0}', space=sflag, size = 0x8, scoped, tag = 'scoped memory for tpu_custom_call.1']
    #allocation5 [shape = 'u8[131072]{0}', space=vmem, size = 0x20000, scoped, tag = 'input window, operand 1, single buffered']
    #allocation6 [shape = 's32[1]{0}', space=sflag, size = 0x4, scoped, tag = 'scoped memory for tpu_custom_call.1']
    #allocation7 [shape = 'u8[65536]{0}', space=vmem, size = 0x10000, scoped, tag = 'input window, operand 3, single buffered']
    #allocation8 [shape = 'u8[8192]{0}', space=vmem, size = 0x2000, scoped, tag = 'output window, operand 0']
    %9 = vsyncpa [#allocation3], 0
    %s10 = scalar_lea.sflag [#allocation3], 1
    %11 = vsyncpa %s10, 0
    %12 = vsyncpa [#allocation6], 0
    %13 = vsyncpa [#allocation4], 0
    %s14 = scalar_lea.sflag [#allocation4], 1
    %15 = vsyncpa %s14, 0
    loop: start=0, step=1, limit=4
    $region2: #{tpu_custom_call.1} parent=1 // loop_pre_header
      _
    $region3: #{tpu_custom_call.1} parent=1 // loop_header
      %s17 = sphi 0, %s21
      %p18 = scmp.ge.s32.totalorder %s17, 4
      %s27 = sphi 0, %s29
      %s30 = sphi 0, %s27
      %s31 = sphi 0, %s30
      %s47 = sphi 0, %s31
      %s51 = sphi 0, %s51
      %s53 = sphi 0, %s51
      %s54 = sphi 0, %s53
      %s68 = sphi 0, %s54
      %s72 = sphi 0, %s72
      %s74 = sphi 0, %s72
      %s75 = sphi 0, %s74
      %s89 = sphi 0, %s75
      %s93 = sphi 0, %s93
      %s95 = sphi 0, %s93
      %s96 = sphi 0, %s95
      %s110 = sphi 0, %s96
      %s116 = sphi 0, %s118
      %s119 = sphi 0, %s116
      %s120 = sphi 0, %s119
      %s136 = sphi 0, %s120
    $region4: #{tpu_custom_call.1} parent=1 // loop_header_branch
      %20 = sbr.rel (%p18) target = $region8
    $region5: #{tpu_custom_call.1} parent=1 // loop_body
      %s22 = ssub.s32 %s17, 1
      %s23 = ssub.s32 %s17, 2
      %s24 = sadd.s32 %s17, 1
      %s25 = ssub.s32 %s17, %s24
      %p26 = scmp.eq.s32.totalorder %s25, 0
      %s28 = sadd.s32 %s27, 1
      %s29 = scalar_select %p26, %s27, %s28
      %p32 = pneg %p26
      %p33 = scmp.eq.s32.totalorder %s17, 1
      %p34 = por %p32, %p33
      %p35 = scmp.ne.s32.totalorder %s27, %s30
      %p36 = scmp.eq.s32.totalorder %s17, 0
      %p37 = por %p35, %p36
      %p38 = scmp.ne.s32.totalorder %s27, %s30
      %p39 = scmp.eq.s32.totalorder %s22, 1
      %p40 = por %p38, %p39
      %p41 = scmp.ne.s32.totalorder %s30, %s31
      %p42 = scmp.eq.s32.totalorder %s22, 0
      %p43 = por %p41, %p42
      %p44 = scmp.ne.s32.totalorder %s30, %s31
      %p45 = scmp.eq.s32.totalorder %s23, 1
      %p46 = por %p44, %p45
      %p48 = scmp.ne.s32.totalorder %s31, %s47
      %p49 = scmp.eq.s32.totalorder %s23, 0
      %p50 = por %p48, %p49
      %s52 = sadd.s32 %s51, 1
      %p55 = scmp.eq.s32.totalorder %s17, 1
      %p56 = scmp.ne.s32.totalorder %s51, %s53
      %p57 = scmp.eq.s32.totalorder %s17, 0
      %p58 = por %p56, %p57
      %p59 = scmp.ne.s32.totalorder %s51, %s53
      %p60 = scmp.eq.s32.totalorder %s22, 1
      %p61 = por %p59, %p60
      %p62 = scmp.ne.s32.totalorder %s53, %s54
      %p63 = scmp.eq.s32.totalorder %s22, 0
      %p64 = por %p62, %p63
      %p65 = scmp.ne.s32.totalorder %s53, %s54
      %p66 = scmp.eq.s32.totalorder %s23, 1
      %p67 = por %p65, %p66
      %p69 = scmp.ne.s32.totalorder %s54, %s68
      %p70 = scmp.eq.s32.totalorder %s23, 0
      %p71 = por %p69, %p70
      %s73 = sadd.s32 %s72, 1
      %p76 = scmp.eq.s32.totalorder %s17, 1
      %p77 = scmp.ne.s32.totalorder %s72, %s74
      %p78 = scmp.eq.s32.totalorder %s17, 0
      %p79 = por %p77, %p78
      %p80 = scmp.ne.s32.totalorder %s72, %s74
      %p81 = scmp.eq.s32.totalorder %s22, 1
      %p82 = por %p80, %p81
      %p83 = scmp.ne.s32.totalorder %s74, %s75
      %p84 = scmp.eq.s32.totalorder %s22, 0
      %p85 = por %p83, %p84
      %p86 = scmp.ne.s32.totalorder %s74, %s75
      %p87 = scmp.eq.s32.totalorder %s23, 1
      %p88 = por %p86, %p87
      %p90 = scmp.ne.s32.totalorder %s75, %s89
      %p91 = scmp.eq.s32.totalorder %s23, 0
      %p92 = por %p90, %p91
      %s94 = sadd.s32 %s93, 1
      %p97 = scmp.eq.s32.totalorder %s17, 1
      %p98 = scmp.ne.s32.totalorder %s93, %s95
      %p99 = scmp.eq.s32.totalorder %s17, 0
      %p100 = por %p98, %p99
      %p101 = scmp.ne.s32.totalorder %s93, %s95
      %p102 = scmp.eq.s32.totalorder %s22, 1
      %p103 = por %p101, %p102
      %p104 = scmp.ne.s32.totalorder %s95, %s96
      %p105 = scmp.eq.s32.totalorder %s22, 0
      %p106 = por %p104, %p105
      %p107 = scmp.ne.s32.totalorder %s95, %s96
      %p108 = scmp.eq.s32.totalorder %s23, 1
      %p109 = por %p107, %p108
      %p111 = scmp.ne.s32.totalorder %s96, %s110
      %p112 = scmp.eq.s32.totalorder %s23, 0
      %p113 = por %p111, %p112
      %s114 = ssub.s32 %s17, %s24
      %p115 = scmp.eq.s32.totalorder %s114, 0
      %s117 = sadd.s32 %s116, 1
      %s118 = scalar_select %p115, %s116, %s117
      %p121 = pneg %p115
      %p122 = scmp.eq.s32.totalorder %s17, 1
      %p123 = por %p121, %p122
      %p124 = scmp.ne.s32.totalorder %s116, %s119
      %p125 = scmp.eq.s32.totalorder %s17, 0
      %p126 = por %p124, %p125
      %p127 = scmp.ne.s32.totalorder %s116, %s119
      %p128 = scmp.eq.s32.totalorder %s22, 1
      %p129 = por %p127, %p128
      %p130 = scmp.ne.s32.totalorder %s119, %s120
      %p131 = scmp.eq.s32.totalorder %s22, 0
      %p132 = por %p130, %p131
      %p133 = scmp.ne.s32.totalorder %s119, %s120
      %p134 = scmp.eq.s32.totalorder %s23, 1
      %p135 = por %p133, %p134
      %p137 = scmp.ne.s32.totalorder %s120, %s136
      %p138 = scmp.eq.s32.totalorder %s23, 0
      %p139 = por %p137, %p138
      %p140 = scmp.le.s32.totalorder 1, %s17
      %p141 = scmp.lt.s32.totalorder %s17, 3
      %p142 = pnand %p140, %p141
      %p143 = pneg %p142
      // Predicated region
      $region9: #{tpu_custom_call.1} parent=5 // pred_check
        _
      $region10: #{tpu_custom_call.1} parent=5 // pred_check_branch
        %145 = sbr.rel (%p142) target = $region12
      $region11: #{tpu_custom_call.1} parent=5 // pred_region
        %s146 = ssub.s32 %s17, 1
        // Predicated region
        $region13: #{tpu_custom_call.1} parent=11 // pred_check
          %p147 = pneg %p64
        $region14: #{tpu_custom_call.1} parent=11 // pred_check_branch
          %149 = sbr.rel (%p147) target = $region16
        $region15: #{tpu_custom_call.1} parent=11 // pred_region
          %s151 = ssub.s32 4096, 4096
          %152 = vsyncadd [#allocation6], %s151
          %s153 = sshll.u32 [#allocation5], 4
          %s154 = int_to_ptr.vmem [resolvable:$true] %s153
          %159 = dma.hbm_to_vmem [thread:$0]  %s1, 4096, %s154, [#allocation6], 256, 256, 16
        $region16: #{tpu_custom_call.1} parent=11 // pred_fallthru
          _
        // Predicated region
        $region17: #{tpu_custom_call.1} parent=11 // pred_check
          %p160 = pneg %p85
        $region18: #{tpu_custom_call.1} parent=11 // pred_check_branch
          %162 = sbr.rel (%p160) target = $region20
        $region19: #{tpu_custom_call.1} parent=11 // pred_region
          _
        $region20: #{tpu_custom_call.1} parent=11 // pred_fallthru
          _
        // Predicated region
        $region21: #{tpu_custom_call.1} parent=11 // pred_check
          %p163 = pneg %p106
        $region22: #{tpu_custom_call.1} parent=11 // pred_check_branch
          %165 = sbr.rel (%p163) target = $region24
        $region23: #{tpu_custom_call.1} parent=11 // pred_region
          %s167 = ssub.s32 2048, 2048
          %168 = vsyncadd [#allocation6], %s167
          %s169 = sshll.u32 [#allocation7], 4
          %s170 = int_to_ptr.vmem [resolvable:$true] %s169
          %175 = dma.hbm_to_vmem [thread:$0]  %s3, 2048, %s170, [#allocation6], 128, 128, 8
        $region24: #{tpu_custom_call.1} parent=11 // pred_fallthru
          _
      $region12: #{tpu_custom_call.1} parent=5 // pred_fallthru
        _
      %p176 = scmp.lt.s32.totalorder %s17, 2
      // Predicated region
      $region25: #{tpu_custom_call.1} parent=5 // pred_check
        %p177 = pneg %p176
      $region26: #{tpu_custom_call.1} parent=5 // pred_check_branch
        %179 = sbr.rel (%p177) target = $region28
      $region27: #{tpu_custom_call.1} parent=5 // pred_region
        // Predicated region
        $region29: #{tpu_custom_call.1} parent=27 // pred_check
          %p180 = pneg %p37
        $region30: #{tpu_custom_call.1} parent=27 // pred_check_branch
          %182 = sbr.rel (%p180) target = $region32
        $region31: #{tpu_custom_call.1} parent=27 // pred_region
          %s183 = sand.u32 %s27, 1
          %s184 = scalar_lea.sflag [#allocation3], %s183
          %s185 = sand.u32 %s27, 1
          %s186 = smul.addr %s185, 8
          %s187 = scalar_lea.vmem [#allocation2], %s186
          %s189 = ssub.s32 128, 128
          %190 = vsyncadd %s184, %s189
          %s191 = smul.addr %s17, 128
          %s192 = scalar_lea.hbm %s0, %s191
          %s194 = sshll.u32 %s187, 4
          %s195 = int_to_ptr.vmem [resolvable:$true] %s194
          %197 = dma.hbm_to_vmem [thread:$0]  %s192, 128, %s195, %s184
        $region32: #{tpu_custom_call.1} parent=27 // pred_fallthru
          _
      $region28: #{tpu_custom_call.1} parent=5 // pred_fallthru
        _
      %p198 = scmp.le.s32.totalorder 1, %s17
      %p199 = scmp.lt.s32.totalorder %s17, 3
      %p200 = pnand %p198, %p199
      %p201 = pneg %p200
      // Predicated region
      $region33: #{tpu_custom_call.1} parent=5 // pred_check
        _
      $region34: #{tpu_custom_call.1} parent=5 // pred_check_branch
        %203 = sbr.rel (%p200) target = $region36
      $region35: #{tpu_custom_call.1} parent=5 // pred_region
        %s204 = ssub.s32 %s17, 1
        %s205 = sand.u32 %s30, 1
        %s206 = scalar_lea.sflag [#allocation3], %s205
        %s207 = sand.u32 %s30, 1
        %s208 = smul.addr %s207, 8
        %s209 = scalar_lea.vmem [#allocation2], %s208
        // Predicated region
        $region37: #{tpu_custom_call.1} parent=35 // pred_check
          %p210 = pneg %p43
        $region38: #{tpu_custom_call.1} parent=35 // pred_check_branch
          %212 = sbr.rel (%p210) target = $region40
        $region39: #{tpu_custom_call.1} parent=35 // pred_region
          %213 = dma.done %s206, 128
        $region40: #{tpu_custom_call.1} parent=35 // pred_fallthru
          _
        // Predicated region
        $region41: #{tpu_custom_call.1} parent=35 // pred_check
          %p214 = pneg %p64
        $region42: #{tpu_custom_call.1} parent=35 // pred_check_branch
          %216 = sbr.rel (%p214) target = $region44
        $region43: #{tpu_custom_call.1} parent=35 // pred_region
          %217 = dma.done [#allocation6], 4096
        $region44: #{tpu_custom_call.1} parent=35 // pred_fallthru
          _
        // Predicated region
        $region45: #{tpu_custom_call.1} parent=35 // pred_check
          %p218 = pneg %p106
        $region46: #{tpu_custom_call.1} parent=35 // pred_check_branch
          %220 = sbr.rel (%p218) target = $region48
        $region47: #{tpu_custom_call.1} parent=35 // pred_region
          %221 = dma.done [#allocation6], 2048
        $region48: #{tpu_custom_call.1} parent=35 // pred_fallthru
          _
        %s222 = sand.u32 %s30, 1
        %s223 = scalar_lea.sflag [#allocation3], %s222
        %s224 = sand.u32 %s30, 1
        %s225 = smul.addr %s224, 8
        %s226 = scalar_lea.vmem [#allocation2], %s225
        %p227 = pneg %p43
        %p228 = pneg %p40
        %p229 = pneg %p64
        %p230 = pneg %p61
        %p231 = pneg %p85
        %p232 = pneg %p82
        %p233 = pneg %p106
        %p234 = pneg %p103
        %p235 = pneg %p132
        %p236 = pneg %p129
        %s237 = sand.u32 %s119, 1
        %s238 = scalar_lea.sflag [#allocation4], %s237
        %s239 = sand.u32 %s119, 1
        %s240 = smul.addr %s239, 8
        %s241 = scalar_lea.vmem [#allocation8], %s240
        %v242 = vld [vmem:[%s209] sm:$0xff]
        %v243 = vld [vmem:[#allocation5] sm:$0xff]
        %v244 = vld [vmem:[#allocation5 + $0x8] sm:$0xff]
        %v245 = vld [vmem:[#allocation5 + $0x10] sm:$0xff]
        %v246 = vld [vmem:[#allocation5 + $0x18] sm:$0xff]
        %v247 = vld [vmem:[#allocation5 + $0x20] sm:$0xff]
        %v248 = vld [vmem:[#allocation5 + $0x28] sm:$0xff]
        %v249 = vld [vmem:[#allocation5 + $0x30] sm:$0xff]
        %v250 = vld [vmem:[#allocation5 + $0x38] sm:$0xff]
        %v251 = vld [vmem:[#allocation5 + $0x40] sm:$0xff]
        %v252 = vld [vmem:[#allocation5 + $0x48] sm:$0xff]
        %v253 = vld [vmem:[#allocation5 + $0x50] sm:$0xff]
        %v254 = vld [vmem:[#allocation5 + $0x58] sm:$0xff]
        %v255 = vld [vmem:[#allocation5 + $0x60] sm:$0xff]
        %v256 = vld [vmem:[#allocation5 + $0x68] sm:$0xff]
        %v257 = vld [vmem:[#allocation5 + $0x70] sm:$0xff]
        %v258 = vld [vmem:[#allocation5 + $0x78] sm:$0xff]
        %v259 = vld [vmem:[#allocation5 + $0x80] sm:$0xff]
        %v260 = vld [vmem:[#allocation5 + $0x88] sm:$0xff]
        %v261 = vld [vmem:[#allocation5 + $0x90] sm:$0xff]
        %v262 = vld [vmem:[#allocation5 + $0x98] sm:$0xff]
        %v263 = vld [vmem:[#allocation5 + $0xa0] sm:$0xff]
        %v264 = vld [vmem:[#allocation5 + $0xa8] sm:$0xff]
        %v265 = vld [vmem:[#allocation5 + $0xb0] sm:$0xff]
        %v266 = vld [vmem:[#allocation5 + $0xb8] sm:$0xff]
        %v267 = vld [vmem:[#allocation5 + $0xc0] sm:$0xff]
        %v268 = vld [vmem:[#allocation5 + $0xc8] sm:$0xff]
        %v269 = vld [vmem:[#allocation5 + $0xd0] sm:$0xff]
        %v270 = vld [vmem:[#allocation5 + $0xd8] sm:$0xff]
        %v271 = vld [vmem:[#allocation5 + $0xe0] sm:$0xff]
        %v272 = vld [vmem:[#allocation5 + $0xe8] sm:$0xff]
        %v273 = vld [vmem:[#allocation5 + $0xf0] sm:$0xff]
        %v274 = vld [vmem:[#allocation5 + $0xf8] sm:$0xff]
        %v275 = vld [vmem:[%s2] sm:$0x3]
        %v277 = vlaneseq
        %v278 = vshrl.u32 %v277, 7
        %v279 = vsub.s32 0, %v278
        %v280 = vrot.slane %v275, %v279
        %v281 = vlaneseq
        %v282 = vshrl.u32 %v281, 7
        %v283 = vsub.s32 1, %v282
        %v284 = vrot.slane %v275, %v283
        %287 = vmatprep.subr.mxu0 %v244
        %288 = vmatpush1.msra.mxu0 %v243
        %289 = vmatprep.subr.mxu0 %v246
        %290 = vmatpush1.msra.mxu0 %v245
        %291 = vmatprep.subr.mxu0 %v248
        %292 = vmatpush1.msra.mxu0 %v247
        %293 = vmatprep.subr.mxu0 %v250
        %294 = vmatpush1.msra.mxu0 %v249
        %295 = vmatprep.subr.mxu0 %v252
        %296 = vmatpush1.msra.mxu0 %v251
        %297 = vmatprep.subr.mxu0 %v254
        %298 = vmatpush1.msra.mxu0 %v253
        %299 = vmatprep.subr.mxu0 %v256
        %300 = vmatpush1.msra.mxu0 %v255
        %301 = vmatprep.subr.mxu0 %v258
        %302 = vmatpush1.msra.mxu0 %v257
        %303 = vmatprep.subr.mxu0 %v260
        %304 = vmatpush1.msra.mxu0 %v259
        %305 = vmatprep.subr.mxu0 %v262
        %306 = vmatpush1.msra.mxu0 %v261
        %307 = vmatprep.subr.mxu0 %v264
        %308 = vmatpush1.msra.mxu0 %v263
        %309 = vmatprep.subr.mxu0 %v266
        %310 = vmatpush1.msra.mxu0 %v265
        %311 = vmatprep.subr.mxu0 %v268
        %312 = vmatpush1.msra.mxu0 %v267
        %313 = vmatprep.subr.mxu0 %v270
        %314 = vmatpush1.msra.mxu0 %v269
        %315 = vmatprep.subr.mxu0 %v272
        %316 = vmatpush1.msra.mxu0 %v271
        %317 = vmatprep.subr.mxu0 %v274
        %318 = vmatpush1.msra.mxu0 %v273
        %319 = vmatprep.subr.mxu0 0.0
        %320 = vmatpush1.msra.mxu0 0.0
        %321 = vmatprep.subr.mxu0 0.0
        %322 = vmatpush1.msra.mxu0 0.0
        %323 = vmatprep.subr.mxu0 0.0
        %324 = vmatpush1.msra.mxu0 0.0
        %325 = vmatprep.subr.mxu0 0.0
        %326 = vmatpush1.msra.mxu0 0.0
        %327 = vmatprep.subr.mxu0 0.0
        %328 = vmatpush1.msra.mxu0 0.0
        %329 = vmatprep.subr.mxu0 0.0
        %330 = vmatpush1.msra.mxu0 0.0
        %331 = vmatprep.subr.mxu0 0.0
        %332 = vmatpush1.msra.mxu0 0.0
        %333 = vmatprep.subr.mxu0 0.0
        %334 = vmatpush1.msra.mxu0 0.0
        %335 = vmatprep.subr.mxu0 0.0
        %336 = vmatpush1.msra.mxu0 0.0
        %337 = vmatprep.subr.mxu0 0.0
        %338 = vmatpush1.msra.mxu0 0.0
        %339 = vmatprep.subr.mxu0 0.0
        %340 = vmatpush1.msra.mxu0 0.0
        %341 = vmatprep.subr.mxu0 0.0
        %342 = vmatpush1.msra.mxu0 0.0
        %343 = vmatprep.subr.mxu0 0.0
        %344 = vmatpush1.msra.mxu0 0.0
        %345 = vmatprep.subr.mxu0 0.0
        %346 = vmatpush1.msra.mxu0 0.0
        %347 = vmatprep.subr.mxu0 0.0
        %348 = vmatpush1.msra.mxu0 0.0
        %349 = vmatprep.subr.mxu0 0.0
        %350 = vmatpush1.msra.mxu0 0.0
        %351 = vmatprep.mubr.f32.mxu0 0.0
        %352 = vmatmul.mubr.f32.gmra.mrb[0].mxu0 %v242
        %v353 = vpop.f32.mrb[0].mxu0
        %v354 = vadd.f32 %v280, %v353
        %v355 = vpop.f32.mrb[0].mxu0
        %v356 = vadd.f32 %v284, %v355
        %357 = vdwg.mxu0
        %v358 = vmax.f32 %v354, 0.0
        %v359 = vmax.f32 %v356, 0.0
        %v360 = vrot.slane %v359, 4
        %v361 = vadd.f32 %v359, %v360
        %v362 = vrot.slane %v361, 2
        %v363 = vadd.f32 %v361, %v362
        %v364 = vrot.slane %v363, 1
        %v365 = vadd.f32 %v363, %v364
        %v366 = vrcp.pop 8.0
        %v367 = vmul.f32 %v365, %v366
        %v368 = vmul.f32 %v358, %v367
        %v369 = vmul.f32 %v358, %v358
        %v370 = vmul.f32 %v367, %v367
        %v371 = vld [vmem:[#allocation7] sm:$0xff]
        %v372 = vld [vmem:[#allocation7 + $0x8] sm:$0xff]
        %v373 = vld [vmem:[#allocation7 + $0x10] sm:$0xff]
        %v374 = vld [vmem:[#allocation7 + $0x18] sm:$0xff]
        %v375 = vld [vmem:[#allocation7 + $0x20] sm:$0xff]
        %v376 = vld [vmem:[#allocation7 + $0x28] sm:$0xff]
        %v377 = vld [vmem:[#allocation7 + $0x30] sm:$0xff]
        %v378 = vld [vmem:[#allocation7 + $0x38] sm:$0xff]
        %v379 = vld [vmem:[#allocation7 + $0x40] sm:$0xff]
        %v380 = vld [vmem:[#allocation7 + $0x48] sm:$0xff]
        %v381 = vld [vmem:[#allocation7 + $0x50] sm:$0xff]
        %v382 = vld [vmem:[#allocation7 + $0x58] sm:$0xff]
        %v383 = vld [vmem:[#allocation7 + $0x60] sm:$0xff]
        %v384 = vld [vmem:[#allocation7 + $0x68] sm:$0xff]
        %v385 = vld [vmem:[#allocation7 + $0x70] sm:$0xff]
        %v386 = vld [vmem:[#allocation7 + $0x78] sm:$0xff]
        %387 = vmatprep.subr.mxu0 0.0
        %388 = vmatpush1.msra.mxu0 %v371
        %389 = vmatprep.subr.mxu0 0.0
        %390 = vmatpush1.msra.mxu0 %v372
        %391 = vmatprep.subr.mxu0 0.0
        %392 = vmatpush1.msra.mxu0 %v373
        %393 = vmatprep.subr.mxu0 0.0
        %394 = vmatpush1.msra.mxu0 %v374
        %395 = vmatprep.subr.mxu0 0.0
        %396 = vmatpush1.msra.mxu0 %v375
        %397 = vmatprep.subr.mxu0 0.0
        %398 = vmatpush1.msra.mxu0 %v376
        %399 = vmatprep.subr.mxu0 0.0
        %400 = vmatpush1.msra.mxu0 %v377
        %401 = vmatprep.subr.mxu0 0.0
        %402 = vmatpush1.msra.mxu0 %v378
        %403 = vmatprep.subr.mxu0 0.0
        %404 = vmatpush1.msra.mxu0 %v379
        %405 = vmatprep.subr.mxu0 0.0
        %406 = vmatpush1.msra.mxu0 %v380
        %407 = vmatprep.subr.mxu0 0.0
        %408 = vmatpush1.msra.mxu0 %v381
        %409 = vmatprep.subr.mxu0 0.0
        %410 = vmatpush1.msra.mxu0 %v382
        %411 = vmatprep.subr.mxu0 0.0
        %412 = vmatpush1.msra.mxu0 %v383
        %413 = vmatprep.subr.mxu0 0.0
        %414 = vmatpush1.msra.mxu0 %v384
        %415 = vmatprep.subr.mxu0 0.0
        %416 = vmatpush1.msra.mxu0 %v385
        %417 = vmatprep.subr.mxu0 0.0
        %418 = vmatpush1.msra.mxu0 %v386
        %419 = vmatprep.subr.mxu0 0.0
        %420 = vmatpush1.msra.mxu0 0.0
        %421 = vmatprep.subr.mxu0 0.0
        %422 = vmatpush1.msra.mxu0 0.0
        %423 = vmatprep.subr.mxu0 0.0
        %424 = vmatpush1.msra.mxu0 0.0
        %425 = vmatprep.subr.mxu0 0.0
        %426 = vmatpush1.msra.mxu0 0.0
        %427 = vmatprep.subr.mxu0 0.0
        %428 = vmatpush1.msra.mxu0 0.0
        %429 = vmatprep.subr.mxu0 0.0
        %430 = vmatpush1.msra.mxu0 0.0
        %431 = vmatprep.subr.mxu0 0.0
        %432 = vmatpush1.msra.mxu0 0.0
        %433 = vmatprep.subr.mxu0 0.0
        %434 = vmatpush1.msra.mxu0 0.0
        %435 = vmatprep.subr.mxu0 0.0
        %436 = vmatpush1.msra.mxu0 0.0
        %437 = vmatprep.subr.mxu0 0.0
        %438 = vmatpush1.msra.mxu0 0.0
        %439 = vmatprep.subr.mxu0 0.0
        %440 = vmatpush1.msra.mxu0 0.0
        %441 = vmatprep.subr.mxu0 0.0
        %442 = vmatpush1.msra.mxu0 0.0
        %443 = vmatprep.subr.mxu0 0.0
        %444 = vmatpush1.msra.mxu0 0.0
        %445 = vmatprep.subr.mxu0 0.0
        %446 = vmatpush1.msra.mxu0 0.0
        %447 = vmatprep.subr.mxu0 0.0
        %448 = vmatpush1.msra.mxu0 0.0
        %449 = vmatprep.subr.mxu0 0.0
        %450 = vmatpush1.msra.mxu0 0.0
        %451 = vmatprep.mubr.f32.mxu0 0.0
        %452 = vmatmul.mubr.f32.gmra.mrb[0].mxu0 %v368
        %v453 = vpop.f32.mrb[0].mxu0
        %v454 = vadd.f32 0.0, %v453
        %v455 = vpop.f32.mrb[0].mxu0
        %456 = vmatprep.mubr.f32.mxu0 0.0
        %457 = vmatmul.mubr.f32.gmra.mrb[0].mxu0 %v369
        %v458 = vpop.f32.mrb[0].mxu0
        %v459 = vadd.f32 0.0, %v458
        %v460 = vpop.f32.mrb[0].mxu0
        %461 = vmatprep.mubr.f32.mxu0 0.0
        %462 = vmatmul.mubr.f32.gmra.mrb[0].mxu0 %v370
        %v463 = vpop.f32.mrb[0].mxu0
        %v464 = vadd.f32 0.0, %v463
        %v465 = vpop.f32.mrb[0].mxu0
        %466 = vdwg.mxu0
        %v467 = vlaneseq
        %v468 = vshrl.u32 %v467, 7
        %v469 = vsub.s32 0, %v468
        %v470 = vrot.slane %v464, %v469
        %v471 = vmul.f32 %v459, %v470
        %v472 = vmax.f32 %v471, 1e-16
        %v473 = vrsqrt.pop %v472
        %v474 = vmul.f32 %v454, %v473
        %v475 = vmul.f32 %v474, 0.5
        %v476 = vtanh.pop %v475
        %v477 = vmul.f32 %v476, 0.5
        %v478 = vadd.f32 %v477, 0.5
        %v479 = vmul.f32 %v478, %v367
        %480 = vst [vmem:[%s241] sm:$0xff] %v479
        %s481 = sand.u32 %s119, 1
        %s482 = scalar_lea.sflag [#allocation4], %s481
        %s483 = sand.u32 %s119, 1
        %s484 = smul.addr %s483, 8
        %s485 = scalar_lea.vmem [#allocation8], %s484
        // Predicated region
        $region49: #{tpu_custom_call.1} parent=35 // pred_check
          %p486 = pneg %p129
        $region50: #{tpu_custom_call.1} parent=35 // pred_check_branch
          %488 = sbr.rel (%p486) target = $region52
        $region51: #{tpu_custom_call.1} parent=35 // pred_region
          %s490 = ssub.s32 128, 128
          %491 = vsyncadd %s482, %s490
          %s492 = smul.addr %s22, 128
          %s493 = scalar_lea.hbm %s4, %s492
          %s495 = sshll.u32 %s485, 4
          %s496 = int_to_ptr.vmem [resolvable:$true] %s495
          %498 = dma.vmem_to_hbm [thread:$0]  %s496, 128, %s493, %s482
        $region52: #{tpu_custom_call.1} parent=35 // pred_fallthru
          _
      $region36: #{tpu_custom_call.1} parent=5 // pred_fallthru
        _
      %p499 = scmp.le.s32.totalorder 2, %s17
      // Predicated region
      $region53: #{tpu_custom_call.1} parent=5 // pred_check
        %p500 = pneg %p499
      $region54: #{tpu_custom_call.1} parent=5 // pred_check_branch
        %502 = sbr.rel (%p500) target = $region56
      $region55: #{tpu_custom_call.1} parent=5 // pred_region
        %s503 = ssub.s32 %s17, 2
        // Predicated region
        $region57: #{tpu_custom_call.1} parent=55 // pred_check
          %p504 = pneg %p135
        $region58: #{tpu_custom_call.1} parent=55 // pred_check_branch
          %506 = sbr.rel (%p504) target = $region60
        $region59: #{tpu_custom_call.1} parent=55 // pred_region
          %s507 = sand.u32 %s120, 1
          %s508 = scalar_lea.sflag [#allocation4], %s507
          %s509 = sand.u32 %s120, 1
          %s510 = smul.addr %s509, 8
          %s511 = scalar_lea.vmem [#allocation8], %s510
          %512 = dma.done %s508, 128
        $region60: #{tpu_custom_call.1} parent=55 // pred_fallthru
          _
      $region56: #{tpu_custom_call.1} parent=5 // pred_fallthru
        _
    $region6: #{tpu_custom_call.1} parent=1 // loop_footer
      %s21 = sadd.s32 1, %s17
    $region7: #{tpu_custom_call.1} parent=1 // loop_footer_branch
      %16 = sbr.rel target = $region3
    $region8: #{tpu_custom_call.1} parent=1 // loop_exit
      _
    %513 = vsyncpa [#allocation3], 1
    %s514 = scalar_lea.sflag [#allocation3], 1
    %515 = vsyncpa %s514, 1
    %516 = vsyncpa [#allocation6], 1
    %517 = vsyncpa [#allocation4], 1
    %s518 = scalar_lea.sflag [#allocation4], 1
    %519 = vsyncpa %s518, 1

</llo_original>
